<compile_context>
chip_gen: v7x
topology: tpu7x:2x2x1
jax: 0.10.0
libtpu: 0.0.40
codegen_flags: <defaults>
</compile_context>

<pallas_src>
import math

import jax
import jax.numpy as jnp
from jax.experimental import pallas as pl
from jax.experimental.pallas import tpu as pltpu


_MIN_PALLAS_BYTES = 256 * 1024          # below this, plain XLA wins outright
_TARGET_OUT_BLOCK_BYTES = 4 * 1024 * 1024  # ~4 MiB output block per grid step
_MAX_ROW_SLAB_BYTES = 512 * 1024        # cap on a single (c_block*D) output row


def _gp_kernel_3d(z_ref, mean_ref, out_ref):
    # z_ref: (bb, D), mean_ref: (cb, D), out_ref: (bb, cb, D)
    # out[b, c, :] = z[b, :] - mean[c, :]  -- native broadcast, lane-dense store.
    out_ref[...] = z_ref[...][:, None, :] - mean_ref[...][None, :, :]


def _gp_kernel_flat(z_ref, mean_flat_ref, out_ref):
    # z_ref: (bb, D), mean_flat_ref: (1, cd_block), out_ref: (bb, cd_block)
    # out[b, c*D + d] = z[b, d] - mean[c, d]; cd_block is a multiple of D so the
    # flattening stays block-local.
    z = z_ref[...]
    d = z.shape[-1]
    reps = out_ref.shape[-1] // d
    out_ref[...] = jnp.tile(z, (1, reps)) - mean_flat_ref[...]


def _sublane_multiple(dtype):
    itemsize = jnp.dtype(dtype).itemsize
    return max(8, 32 // itemsize)   # 8 for f32, 16 for bf16, 32 for int8/fp8


def _pick_batch_block(b, row_bytes, unit):
    """Largest multiple of `unit` dividing b with block ~<= 4 MiB, >= 2 steps."""
    if b <= unit or b % unit != 0:
        return b
    target_rows = max(unit, _TARGET_OUT_BLOCK_BYTES // max(row_bytes, 1))
    # Keep at least 2 grid steps so both v7x TensorCores get a share.
    target_rows = min(target_rows, max(unit, (b // 2) // unit * unit))
    best = unit
    blk = unit
    while blk <= target_rows:
        if b % blk == 0:
            best = blk
        blk += unit
    return best


def _pick_cd_block(c, d, itemsize):
    """Chunk of the flattened C*D axis: multiple of 128 and of D, divides C*D."""
    cd = c * d
    unit = (d * 128) // math.gcd(d, 128)  # lcm(D, 128)
    if cd * itemsize <= _MAX_ROW_SLAB_BYTES or cd % unit != 0 or cd == unit:
        return cd
    cap = max(unit, _MAX_ROW_SLAB_BYTES // itemsize)
    best = unit
    blk = unit
    while blk <= cap:
        if cd % blk == 0:
            best = blk
        blk += unit
    return best


def _pick_c_block(c, d, itemsize):
    """Chunk of the class axis for the 3-D (D % 128 == 0) path."""
    if c * d * itemsize <= _MAX_ROW_SLAB_BYTES or c % 8 != 0:
        return c
    cap_c = max(8, _MAX_ROW_SLAB_BYTES // (d * itemsize))
    best = 8
    blk = 8
    while blk <= cap_c:
        if c % blk == 0:
            best = blk
        blk += 8
    return best


def gaussian_prior_forward(z, mean, *, force_pallas=False):
    """z: (B, D) latent, mean: (C, D) cluster centers -> (B, C, D)."""
    B, D = z.shape
    C, D2 = mean.shape
    assert D == D2, "latent dim mismatch"

    out_dtype = jnp.result_type(z.dtype, mean.dtype)
    z = z.astype(out_dtype)
    mean = mean.astype(out_dtype)
    itemsize = jnp.dtype(out_dtype).itemsize
    out_bytes = B * C * D * itemsize

    # Pallas launch/pipeline cost dominates at toy sizes: use fused XLA instead.
    if not force_pallas and out_bytes < _MIN_PALLAS_BYTES:
        return z[:, None, :] - mean[None, :, :]

    unit = _sublane_multiple(out_dtype)
    cost = pl.CostEstimate(
        flops=B * C * D,
        transcendentals=0,
        bytes_accessed=itemsize * (B * D + C * D + B * C * D),
    )

    if D % 128 == 0:
        # Lane-aligned D: keep a native 3-D broadcast subtract (no jnp.tile).
        c_block = _pick_c_block(C, D, itemsize)
        row_bytes = c_block * D * itemsize
        block_b = _pick_batch_block(B, row_bytes, unit)
        grid = (B // block_b, C // c_block)
        return pl.pallas_call(
            _gp_kernel_3d,
            out_shape=jax.ShapeDtypeStruct((B, C, D), out_dtype),
            grid=grid,
            in_specs=[
                pl.BlockSpec((block_b, D), lambda i, j: (i, 0)),
                pl.BlockSpec((c_block, D), lambda i, j: (j, 0)),
            ],
            out_specs=pl.BlockSpec((block_b, c_block, D), lambda i, j: (i, j, 0)),
            compiler_params=pltpu.CompilerParams(
                dimension_semantics=("parallel", "parallel")),
            cost_estimate=cost,
        )(z, mean)

    # D < 128: flattened lane-dense (B, C*D) output slab, CD axis tiled if big.
    CD = C * D
    cd_block = _pick_cd_block(C, D, itemsize)
    block_b = _pick_batch_block(B, cd_block * itemsize, unit)
    mean_flat = mean.reshape(1, CD)   # c-major, d-minor: one lane-dense row
    grid = (B // block_b, CD // cd_block)

    out_flat = pl.pallas_call(
        _gp_kernel_flat,
        out_shape=jax.ShapeDtypeStruct((B, CD), out_dtype),
        grid=grid,
        in_specs=[
            pl.BlockSpec((block_b, D), lambda i, j: (i, 0)),
            pl.BlockSpec((1, cd_block), lambda i, j: (0, j)),
        ],
        out_specs=pl.BlockSpec((block_b, cd_block), lambda i, j: (i, j)),
        compiler_params=pltpu.CompilerParams(
            dimension_semantics=("parallel", "parallel")),
        cost_estimate=cost,
    )(z, mean_flat)

    return out_flat.reshape(B, C, D)


if __name__ == "__main__":
    key = jax.random.PRNGKey(0)
    k_mean, k_z, k_z2, k_mean3, k_z3 = jax.random.split(key, 5)

    # 1) Toy shape implied by the module, forced through the Pallas (flat) path.
    batch, num_classes, latent_dim = 4, 8, 16
    mean = jax.random.normal(k_mean, (num_classes, latent_dim), jnp.float32)
    z = jax.random.normal(k_z, (batch, latent_dim), jnp.float32)
    out = jax.block_until_ready(gaussian_prior_forward(z, mean, force_pallas=True))
    assert out.shape == (batch, num_classes, latent_dim)
    ref = z[:, None, :] - mean[None, :, :]
    assert jnp.allclose(out, ref, atol=1e-6, rtol=1e-6), "toy-shape mismatch"

    # 2) Larger batch goes through the default (Pallas) path and exercises the
    #    multi-step batch grid (>= 2 parallel steps).
    big_b = 2048
    z2 = jax.random.normal(k_z2, (big_b, latent_dim), jnp.float32)
    out2 = jax.block_until_ready(gaussian_prior_forward(z2, mean))
    ref2 = z2[:, None, :] - mean[None, :, :]
    assert jnp.allclose(out2, ref2, atol=1e-6, rtol=1e-6), "large-batch mismatch"

    # 3) Lane-aligned latent dim exercises the native 3-D broadcast path.
    mean3 = jax.random.normal(k_mean3, (8, 128), jnp.float32)
    z3 = jax.random.normal(k_z3, (16, 128), jnp.float32)
    out3 = jax.block_until_ready(gaussian_prior_forward(z3, mean3, force_pallas=True))
    ref3 = z3[:, None, :] - mean3[None, :, :]
    assert jnp.allclose(out3, ref3, atol=1e-6, rtol=1e-6), "3-D-path mismatch"

    print("KERNEL_OK")
</pallas_src>

<mosaic_0001>
module attributes {stable_mosaic.version = 11 : i64} {
  func.func @_gp_kernel_flat(%arg0: i32, %arg1: i32, %arg2: memref<4x16xf32, #tpu.memory_space<vmem>>, %arg3: memref<1x128xf32, #tpu.memory_space<vmem>>, %arg4: memref<4x128xf32, #tpu.memory_space<vmem>>) attributes {dimension_semantics = [#tpu.dimension_semantics<parallel>, #tpu.dimension_semantics<parallel>], iteration_bounds = array<i64: 1, 1>, scalar_prefetch = 0 : i64, scratch_operands = 0 : i64, tpu.core_type = #tpu.core_type<tc>, window_params = [{transform_indices = @transform_0, window_bounds = array<i64: 4, 16>}, {transform_indices = @transform_1, window_bounds = array<i64: 1, 128>}, {transform_indices = @transform_2, window_bounds = array<i64: 4, 128>}]} {
    %c0 = arith.constant 0 : index
    %c0_0 = arith.constant 0 : index
    %0 = vector.load %arg2[%c0, %c0_0] : memref<4x16xf32, #tpu.memory_space<vmem>>, vector<4x16xf32>
    %1 = tpu.concatenate %0, %0, %0, %0, %0, %0, %0, %0 in 1 : vector<4x16xf32>, vector<4x16xf32>, vector<4x16xf32>, vector<4x16xf32>, vector<4x16xf32>, vector<4x16xf32>, vector<4x16xf32>, vector<4x16xf32> -> vector<4x128xf32>
    %c0_1 = arith.constant 0 : index
    %c0_2 = arith.constant 0 : index
    %2 = vector.load %arg3[%c0_1, %c0_2] : memref<1x128xf32, #tpu.memory_space<vmem>>, vector<1x128xf32>
    %3 = vector.broadcast %2 : vector<1x128xf32> to vector<4x128xf32>
    %4 = arith.subf %1, %3 : vector<4x128xf32>
    %c0_3 = arith.constant 0 : index
    %c0_4 = arith.constant 0 : index
    %5 = vector.load %arg4[%c0_3, %c0_4] : memref<4x128xf32, #tpu.memory_space<vmem>>, vector<4x128xf32>
    tpu.vector_store %arg4[%c0_3, %c0_4], %4 {strides = array<i32>} : memref<4x128xf32, #tpu.memory_space<vmem>>, vector<4x128xf32>,
    return
  }
  func.func @transform_0(%arg0: i32, %arg1: i32) -> (i32, i32) {
    %c0_i32 = arith.constant 0 : i32
    %c0_i32_0 = arith.constant 0 : i32
    return %arg0, %c0_i32 : i32, i32
  }
  func.func @transform_1(%arg0: i32, %arg1: i32) -> (i32, i32) {
    %c0_i32 = arith.constant 0 : i32
    %c0_i32_0 = arith.constant 0 : i32
    return %c0_i32, %arg1 : i32, i32
  }
  func.func @transform_2(%arg0: i32, %arg1: i32) -> (i32, i32) {
    %c0_i32 = arith.constant 0 : i32
    return %arg0, %arg1 : i32, i32
  }
}

</mosaic_0001>

<llo_original>
// kernel: tpu_custom_call.1
$region0: #{tpu_custom_call.1}
  #allocation0 [shape = 'u32[]', space=smem, size = 0x4, offset = 0x4, fixed_abs, tag = 'smem constant byte address 0x4 - core index']
  #allocation1 [shape = 'u32[144,128]{1,0:T(1,128)}', space=vmem, size = 0x12000, scoped, tag = 'internal scratch']
  %s0 = inlined_call_operand.hbm [shape: f32[4,16], index: 0, kind: input, shape index: {}]
  %s1 = inlined_call_operand.vmem [shape: f32[1,128], index: 1, kind: input, shape index: {}]
  %s2 = inlined_call_operand.hbm [shape: f32[4,128], index: 2, kind: output, shape index: {}]
  %s3 = sld [smem:[#allocation0]]
  $region22: #{tpu_custom_call.1} parent=0
    _
  %s5 = ssub.s32 1, %s3
  %s6 = scalar_select 0, %s5, %s3
  $region1: #{tpu_custom_call.1} parent=0
    #allocation2 [shape = 'u8[2048]{0}', space=vmem, size = 0x800, scoped, tag = 'input window, operand 0, single buffered']
    #allocation3 [shape = 's32[1]{0}', space=sflag, size = 0x4, scoped, tag = 'scoped memory for tpu_custom_call.1']
    #allocation4 [shape = 's32[1]{0}', space=sflag, size = 0x4, scoped, tag = 'scoped memory for tpu_custom_call.1']
    #allocation5 [shape = 'u8[2048]{0}', space=vmem, size = 0x800, scoped, tag = 'output window, operand 0, single buffered']
    %7 = vsyncpa [#allocation3], 0
    %8 = vsyncpa [#allocation4], 0
    // Predicated region
    $region2: #{tpu_custom_call.1} parent=1 // pred_check
      _
    $region3: #{tpu_custom_call.1} parent=1 // pred_check_branch
      %10 = sbr.rel (0) target = $region5
    $region4: #{tpu_custom_call.1} parent=1 // pred_region
      %s12 = ssub.s32 64, 64
      %13 = vsyncadd [#allocation3], %s12
      %s15 = sshll.u32 [#allocation2], 4
      %s16 = int_to_ptr.vmem [resolvable:$true] %s15
      %18 = dma.hbm_to_vmem [thread:$0]  %s0, 64, %s16, [#allocation3]
    $region5: #{tpu_custom_call.1} parent=1 // pred_fallthru
      _
    // Predicated region
    $region6: #{tpu_custom_call.1} parent=1 // pred_check
      _
    $region7: #{tpu_custom_call.1} parent=1 // pred_check_branch
      %20 = sbr.rel (0) target = $region9
    $region8: #{tpu_custom_call.1} parent=1 // pred_region
      _
    $region9: #{tpu_custom_call.1} parent=1 // pred_fallthru
      _
    // Predicated region
    $region10: #{tpu_custom_call.1} parent=1 // pred_check
      _
    $region11: #{tpu_custom_call.1} parent=1 // pred_check_branch
      %22 = sbr.rel (0) target = $region13
    $region12: #{tpu_custom_call.1} parent=1 // pred_region
      %23 = dma.done [#allocation3], 64
    $region13: #{tpu_custom_call.1} parent=1 // pred_fallthru
      _
    %v24 = vld [vmem:[#allocation2] sm:$0xf]
    %26 = vrot.lane.b32.xlu0 %v24, 16
    %v27 = vpop.permute.xlu0 %26
    %29 = vrot.lane.b32.xlu0 %v24, 32
    %v30 = vpop.permute.xlu0 %29
    %32 = vrot.lane.b32.xlu0 %v24, 48
    %v33 = vpop.permute.xlu0 %32
    %35 = vrot.lane.b32.xlu0 %v24, 64
    %v36 = vpop.permute.xlu0 %35
    %38 = vrot.lane.b32.xlu0 %v24, 80
    %v39 = vpop.permute.xlu0 %38
    %41 = vrot.lane.b32.xlu0 %v24, 96
    %v42 = vpop.permute.xlu0 %41
    %44 = vrot.lane.b32.xlu0 %v24, 112
    %v45 = vpop.permute.xlu0 %44
    %vm47 = vcmask 130048
    %v48 = vsel %vm47, %v24, %v27
    %vm49 = vcmask 261120
    %v50 = vsel %vm49, %v48, %v30
    %vm51 = vcmask 392192
    %v52 = vsel %vm51, %v50, %v33
    %vm53 = vcmask 523264
    %v54 = vsel %vm53, %v52, %v36
    %vm55 = vcmask 654336
    %v56 = vsel %vm55, %v54, %v39
    %vm57 = vcmask 785408
    %v58 = vsel %vm57, %v56, %v42
    %vm59 = vcmask 916480
    %v60 = vsel %vm59, %v58, %v45
    %v61 = vld [vmem:[%s1] sm:$0x1]
    %v63 = vlaneseq
    %v64 = vshrl.u32 %v63, 7
    %v65 = vsub.s32 0, %v64
    %v66 = vrot.slane %v61, %v65
    %v68 = vsub.f32 %v60, %v66
    %69 = vst [vmem:[#allocation5] sm:$0xf] %v68
    // Predicated region
    $region14: #{tpu_custom_call.1} parent=1 // pred_check
      _
    $region15: #{tpu_custom_call.1} parent=1 // pred_check_branch
      %71 = sbr.rel (0) target = $region17
    $region16: #{tpu_custom_call.1} parent=1 // pred_region
      %s73 = ssub.s32 64, 64
      %74 = vsyncadd [#allocation4], %s73
      %s76 = sshll.u32 [#allocation5], 4
      %s77 = int_to_ptr.vmem [resolvable:$true] %s76
      %79 = dma.vmem_to_hbm [thread:$0]  %s77, 64, %s2, [#allocation4]
    $region17: #{tpu_custom_call.1} parent=1 // pred_fallthru
      _
    // Predicated region
    $region18: #{tpu_custom_call.1} parent=1 // pred_check
      _
    $region19: #{tpu_custom_call.1} parent=1 // pred_check_branch
      %81 = sbr.rel (0) target = $region21
    $region20: #{tpu_custom_call.1} parent=1 // pred_region
      %82 = dma.done [#allocation4], 64
    $region21: #{tpu_custom_call.1} parent=1 // pred_fallthru
      _
    %83 = vsyncpa [#allocation3], 1
    %84 = vsyncpa [#allocation4], 1

</llo_original>
